<compile_context>
chip_gen: v7x
topology: tpu7x:2x2x1
jax: 0.10.0
libtpu: 0.0.40
codegen_flags: <defaults>
</compile_context>

<pallas_src>
import functools

import jax
import jax.numpy as jnp
from jax import lax
from jax.experimental import pallas as pl
from jax.experimental.pallas import tpu as pltpu

NEG_SLOPE = 0.01
EPS = 1e-5


def _leaky(x):
    return jnp.where(x > 0, x, NEG_SLOPE * x)


def bottleneck_kernel(x_ref, w1_ref, b1_ref, w2_ref, b2_ref, w3_ref, b3_ref,
                      o_ref, *, width):
    # x_ref: (1, Cin, HW) — one batch element per grid step (channels-first).
    x = x_ref[0]                                     # (Cin, HW), f32
    Cin, HW = x.shape
    C = w1_ref.shape[0]

    # --- conv1 (1x1, BN1 folded into w1) + bias + LeakyReLU ----------------
    y1 = _leaky(jnp.dot(w1_ref[...], x, preferred_element_type=jnp.float32)
                + b1_ref[...])                       # (C, HW)

    # --- conv2 (3x1, pad (1,0)) as ONE fused matmul over a (3C, HW) stack --
    # A shift along H is a shift by +/-width along the flattened HW lane axis
    # (XLU roll); the wrapped first/last image row is masked to zero.
    col = lax.broadcasted_iota(jnp.int32, (C, HW), 1)
    y_prev = jnp.where(col >= width, pltpu.roll(y1, width, axis=1), 0.0)
    y_next = jnp.where(col < HW - width, pltpu.roll(y1, HW - width, axis=1), 0.0)
    y_stack = jnp.concatenate([y_prev, y1, y_next], axis=0)          # (3C, HW)
    y2 = _leaky(jnp.dot(w2_ref[...], y_stack, preferred_element_type=jnp.float32)
                + b2_ref[...])                       # (C, HW)

    # --- conv3 (1x1, C -> 4C, BN3 folded into w3) + bias -------------------
    y3 = (jnp.dot(w3_ref[...], y2, preferred_element_type=jnp.float32)
          + b3_ref[...])                             # (Cin, HW)

    # --- residual add + LeakyReLU ------------------------------------------
    o_ref[0] = _leaky(y3 + x).astype(o_ref.dtype)


def fold_kernel_params(params):
    """One-time prep: fold eval-mode BN scales into conv weights (bias stays)."""
    (w1, s1, b1, w2, s2, b2, w3, s3, b3) = params
    C = w1.shape[0]
    w1k = w1 * s1[:, None]                                              # (C, Cin)
    w2k = s2[:, None] * jnp.transpose(w2, (1, 0, 2)).reshape(C, 3 * C)  # (C, 3C)
    w3k = w3 * s3[:, None]                                              # (4C, C)
    return (w1k, b1[:, None], w2k, b2[:, None], w3k, b3[:, None])


def bottleneck_forward(x_nchw, kernel_params):
    """x_nchw: (N, Cin, H, W) float32.  Returns (N, Cin, H, W)."""
    (w1k, b1k, w2k, b2k, w3k, b3k) = kernel_params
    N, Cin, H, W = x_nchw.shape
    assert w3k.shape[0] == Cin, "identity add requires in_channels == out_channels*4"
    HW = H * W

    # Metadata-only reshape: channels on sublanes, flattened spatial on lanes.
    x_flat = x_nchw.reshape(N, Cin, HW)

    full = lambda a: pl.BlockSpec(a.shape, lambda n: (0,) * a.ndim)
    kernel = functools.partial(bottleneck_kernel, width=W)

    out_flat = pl.pallas_call(
        kernel,
        out_shape=jax.ShapeDtypeStruct((N, Cin, HW), x_nchw.dtype),
        grid_spec=pltpu.PrefetchScalarGridSpec(
            num_scalar_prefetch=0,
            grid=(N,),
            in_specs=[
                pl.BlockSpec((1, Cin, HW), lambda n: (n, 0, 0)),
                full(w1k), full(b1k), full(w2k), full(b2k), full(w3k), full(b3k),
            ],
            out_specs=pl.BlockSpec((1, Cin, HW), lambda n: (n, 0, 0)),
        ),
        compiler_params=pltpu.CompilerParams(
            dimension_semantics=("parallel",)),
    )(x_flat, w1k, b1k, w2k, b2k, w3k, b3k)

    return out_flat.reshape(N, Cin, H, W)


def make_params(key, in_channels, out_channels):
    """Raw params: conv weights in (O, I[, KH->leading]) layout + folded BN (scale, bias)."""
    C = out_channels
    Cin = in_channels
    Cout = C * 4  # expansion
    ks = jax.random.split(key, 4)

    def fold_bn(k, n):
        kg, kb, km, kv = jax.random.split(k, 4)
        gamma = 1.0 + 0.1 * jax.random.normal(kg, (n,), jnp.float32)
        beta = 0.1 * jax.random.normal(kb, (n,), jnp.float32)
        mean = 0.1 * jax.random.normal(km, (n,), jnp.float32)
        var = jnp.abs(1.0 + 0.1 * jax.random.normal(kv, (n,), jnp.float32))
        scale = gamma / jnp.sqrt(var + EPS)
        bias = beta - mean * scale
        return scale, bias

    w1 = 0.1 * jax.random.normal(ks[0], (C, Cin), jnp.float32)      # (O, I)
    w2 = 0.1 * jax.random.normal(ks[1], (3, C, C), jnp.float32)     # (KH, O, I)
    w3 = 0.1 * jax.random.normal(ks[2], (Cout, C), jnp.float32)     # (O, I)

    kbn = jax.random.split(ks[3], 3)
    s1, b1 = fold_bn(kbn[0], C)
    s2, b2 = fold_bn(kbn[1], C)
    s3, b3 = fold_bn(kbn[2], Cout)
    return (w1, s1, b1, w2, s2, b2, w3, s3, b3)


def bottleneck_reference(x_nchw, params):
    """Pure-JAX reference (NCHW convs via lax) for validation."""
    (w1, s1, b1, w2, s2, b2, w3, s3, b3) = params

    def conv(x, w_oihw, padding):
        return lax.conv_general_dilated(
            x, w_oihw, window_strides=(1, 1), padding=padding,
            dimension_numbers=("NCHW", "OIHW", "NCHW"))

    def bn(x, s, b):  # s, b: (n,)
        return x * s[None, :, None, None] + b[None, :, None, None]

    w1_oihw = w1[:, :, None, None]                         # (C, Cin, 1, 1)
    w2_oihw = jnp.transpose(w2, (1, 2, 0))[:, :, :, None]  # (C, C, 3, 1)
    w3_oihw = w3[:, :, None, None]                         # (Cout, C, 1, 1)

    out = _leaky(bn(conv(x_nchw, w1_oihw, [(0, 0), (0, 0)]), s1, b1))
    out = _leaky(bn(conv(out, w2_oihw, [(1, 1), (0, 0)]), s2, b2))
    out = bn(conv(out, w3_oihw, [(0, 0), (0, 0)]), s3, b3)
    return _leaky(out + x_nchw)


if __name__ == "__main__":
    key = jax.random.PRNGKey(0)
    k_x, k_p = jax.random.split(key)

    # Small shapes consistent with Bottleneck: in_channels == out_channels * 4,
    # and H*W a multiple of 128 so the lane axis stays dense.
    N, out_channels, H, W = 2, 8, 16, 16
    in_channels = out_channels * 4                   # 32

    x = jax.random.normal(k_x, (N, in_channels, H, W), jnp.float32)
    params = make_params(k_p, in_channels, out_channels)
    kparams = fold_kernel_params(params)             # one-time BN-scale fold

    y = bottleneck_forward(x, kparams)
    y = jax.block_until_ready(y)

    y_ref = bottleneck_reference(x, params)
    assert y.shape == (N, in_channels, H, W)
    assert jnp.allclose(y, y_ref, atol=1e-4, rtol=1e-4), "mismatch vs reference"

    print("KERNEL_OK")
</pallas_src>

<mosaic_0001>
module attributes {stable_mosaic.version = 11 : i64} {
  func.func @bottleneck_kernel(%arg0: i32, %arg1: memref<1x32x256xf32, #tpu.memory_space<vmem>>, %arg2: memref<8x32xf32, #tpu.memory_space<vmem>>, %arg3: memref<8x1xf32, #tpu.memory_space<vmem>>, %arg4: memref<8x24xf32, #tpu.memory_space<vmem>>, %arg5: memref<8x1xf32, #tpu.memory_space<vmem>>, %arg6: memref<32x8xf32, #tpu.memory_space<vmem>>, %arg7: memref<32x1xf32, #tpu.memory_space<vmem>>, %arg8: memref<1x32x256xf32, #tpu.memory_space<vmem>>) attributes {dimension_semantics = [#tpu.dimension_semantics<parallel>], iteration_bounds = array<i64: 2>, scalar_prefetch = 0 : i64, scratch_operands = 0 : i64, tpu.core_type = #tpu.core_type<tc>, window_params = [{transform_indices = @transform_0, window_bounds = array<i64: 1, 32, 256>}, {pipeline_mode = #tpu.pipeline_mode<synchronous>, transform_indices = @transform_1, window_bounds = array<i64: 8, 32>}, {pipeline_mode = #tpu.pipeline_mode<synchronous>, transform_indices = @transform_2, window_bounds = array<i64: 8, 1>}, {pipeline_mode = #tpu.pipeline_mode<synchronous>, transform_indices = @transform_3, window_bounds = array<i64: 8, 24>}, {pipeline_mode = #tpu.pipeline_mode<synchronous>, transform_indices = @transform_4, window_bounds = array<i64: 8, 1>}, {pipeline_mode = #tpu.pipeline_mode<synchronous>, transform_indices = @transform_5, window_bounds = array<i64: 32, 8>}, {pipeline_mode = #tpu.pipeline_mode<synchronous>, transform_indices = @transform_6, window_bounds = array<i64: 32, 1>}, {transform_indices = @transform_7, window_bounds = array<i64: 1, 32, 256>}]} {
    %c0 = arith.constant 0 : index
    %c0_0 = arith.constant 0 : index
    %c0_1 = arith.constant 0 : index
    %0 = vector.load %arg1[%c0, %c0_0, %c0_1] : memref<1x32x256xf32, #tpu.memory_space<vmem>>, vector<1x32x256xf32>
    %1 = vector.shape_cast %0 : vector<1x32x256xf32> to vector<32x256xf32>
    %c0_2 = arith.constant 0 : index
    %c0_3 = arith.constant 0 : index
    %2 = vector.load %arg2[%c0_2, %c0_3] : memref<8x32xf32, #tpu.memory_space<vmem>>, vector<8x32xf32>
    %cst = arith.constant dense<0.000000e+00> : vector<8x256xf32>
    %3 = tpu.matmul %2, %1, %cst {dimension_numbers = #tpu.dot_dimension_numbers<[1], [0], [0], [1], [0, 0, 1, 1], [], []>} : vector<8x32xf32>, vector<32x256xf32>, vector<8x256xf32> -> vector<8x256xf32>
    %c0_4 = arith.constant 0 : index
    %c0_5 = arith.constant 0 : index
    %4 = vector.load %arg3[%c0_4, %c0_5] : memref<8x1xf32, #tpu.memory_space<vmem>>, vector<8x1xf32>
    %5 = vector.broadcast %4 : vector<8x1xf32> to vector<8x256xf32>
    %6 = arith.addf %3, %5 : vector<8x256xf32>
    %cst_6 = arith.constant 0.000000e+00 : f32
    %7 = vector.broadcast %cst_6 : f32 to vector<8x256xf32>
    %8 = arith.cmpf ogt, %6, %7 : vector<8x256xf32>
    %cst_7 = arith.constant 0.00999999977 : f32
    %9 = vector.broadcast %cst_7 : f32 to vector<8x256xf32>
    %10 = arith.mulf %9, %6 : vector<8x256xf32>
    %11 = arith.select %8, %6, %10 : vector<8x256xi1>, vector<8x256xf32>
    %12 = tpu.iota {dimensions = array<i32: 1>} : vector<8x256xi32>
    %c16_i32 = arith.constant 16 : i32
    %13 = vector.broadcast %c16_i32 : i32 to vector<8x256xi32>
    %14 = arith.cmpi sge, %12, %13 : vector<8x256xi32>
    %c16_i32_8 = arith.constant 16 : i32
    %15 = tpu.dynamic_rotate %11 by %c16_i32_8 dim 1 : vector<8x256xf32>, i32 -> vector<8x256xf32>
    %cst_9 = arith.constant 0.000000e+00 : f32
    %16 = vector.broadcast %cst_9 : f32 to vector<8x256xf32>
    %17 = arith.select %14, %15, %16 : vector<8x256xi1>, vector<8x256xf32>
    %c240_i32 = arith.constant 240 : i32
    %18 = vector.broadcast %c240_i32 : i32 to vector<8x256xi32>
    %19 = arith.cmpi slt, %12, %18 : vector<8x256xi32>
    %c240_i32_10 = arith.constant 240 : i32
    %20 = tpu.dynamic_rotate %11 by %c240_i32_10 dim 1 : vector<8x256xf32>, i32 -> vector<8x256xf32>
    %cst_11 = arith.constant 0.000000e+00 : f32
    %21 = vector.broadcast %cst_11 : f32 to vector<8x256xf32>
    %22 = arith.select %19, %20, %21 : vector<8x256xi1>, vector<8x256xf32>
    %23 = tpu.concatenate %17, %11, %22 in 0 : vector<8x256xf32>, vector<8x256xf32>, vector<8x256xf32> -> vector<24x256xf32>
    %c0_12 = arith.constant 0 : index
    %c0_13 = arith.constant 0 : index
    %24 = vector.load %arg4[%c0_12, %c0_13] : memref<8x24xf32, #tpu.memory_space<vmem>>, vector<8x24xf32>
    %cst_14 = arith.constant dense<0.000000e+00> : vector<8x256xf32>
    %25 = tpu.matmul %24, %23, %cst_14 {dimension_numbers = #tpu.dot_dimension_numbers<[1], [0], [0], [1], [0, 0, 1, 1], [], []>} : vector<8x24xf32>, vector<24x256xf32>, vector<8x256xf32> -> vector<8x256xf32>
    %c0_15 = arith.constant 0 : index
    %c0_16 = arith.constant 0 : index
    %26 = vector.load %arg5[%c0_15, %c0_16] : memref<8x1xf32, #tpu.memory_space<vmem>>, vector<8x1xf32>
    %27 = vector.broadcast %26 : vector<8x1xf32> to vector<8x256xf32>
    %28 = arith.addf %25, %27 : vector<8x256xf32>
    %cst_17 = arith.constant 0.000000e+00 : f32
    %29 = vector.broadcast %cst_17 : f32 to vector<8x256xf32>
    %30 = arith.cmpf ogt, %28, %29 : vector<8x256xf32>
    %cst_18 = arith.constant 0.00999999977 : f32
    %31 = vector.broadcast %cst_18 : f32 to vector<8x256xf32>
    %32 = arith.mulf %31, %28 : vector<8x256xf32>
    %33 = arith.select %30, %28, %32 : vector<8x256xi1>, vector<8x256xf32>
    %c0_19 = arith.constant 0 : index
    %c0_20 = arith.constant 0 : index
    %34 = vector.load %arg6[%c0_19, %c0_20] : memref<32x8xf32, #tpu.memory_space<vmem>>, vector<32x8xf32>
    %cst_21 = arith.constant dense<0.000000e+00> : vector<32x256xf32>
    %35 = tpu.matmul %34, %33, %cst_21 {dimension_numbers = #tpu.dot_dimension_numbers<[1], [0], [0], [1], [0, 0, 1, 1], [], []>} : vector<32x8xf32>, vector<8x256xf32>, vector<32x256xf32> -> vector<32x256xf32>
    %c0_22 = arith.constant 0 : index
    %c0_23 = arith.constant 0 : index
    %36 = vector.load %arg7[%c0_22, %c0_23] : memref<32x1xf32, #tpu.memory_space<vmem>>, vector<32x1xf32>
    %37 = vector.broadcast %36 : vector<32x1xf32> to vector<32x256xf32>
    %38 = arith.addf %35, %37 : vector<32x256xf32>
    %39 = arith.addf %38, %1 : vector<32x256xf32>
    %cst_24 = arith.constant 0.000000e+00 : f32
    %40 = vector.broadcast %cst_24 : f32 to vector<32x256xf32>
    %41 = arith.cmpf ogt, %39, %40 : vector<32x256xf32>
    %cst_25 = arith.constant 0.00999999977 : f32
    %42 = vector.broadcast %cst_25 : f32 to vector<32x256xf32>
    %43 = arith.mulf %42, %39 : vector<32x256xf32>
    %44 = arith.select %41, %39, %43 : vector<32x256xi1>, vector<32x256xf32>
    %c0_26 = arith.constant 0 : index
    %c0_27 = arith.constant 0 : index
    %c0_28 = arith.constant 0 : index
    %45 = vector.load %arg8[%c0_26, %c0_27, %c0_28] : memref<1x32x256xf32, #tpu.memory_space<vmem>>, vector<1x32x256xf32>
    %46 = vector.shape_cast %45 : vector<1x32x256xf32> to vector<32x256xf32>
    %47 = vector.shape_cast %44 : vector<32x256xf32> to vector<1x32x256xf32>
    tpu.vector_store %arg8[%c0_26, %c0_27, %c0_28], %47 {strides = array<i32>} : memref<1x32x256xf32, #tpu.memory_space<vmem>>, vector<1x32x256xf32>,
    return
  }
  func.func @transform_0(%arg0: i32) -> (i32, i32, i32) {
    %c0_i32 = arith.constant 0 : i32
    %c0_i32_0 = arith.constant 0 : i32
    %c0_i32_1 = arith.constant 0 : i32
    return %arg0, %c0_i32, %c0_i32_0 : i32, i32, i32
  }
  func.func @transform_1(%arg0: i32) -> (i32, i32) {
    %c0_i32 = arith.constant 0 : i32
    %c0_i32_0 = arith.constant 0 : i32
    %c0_i32_1 = arith.constant 0 : i32
    return %c0_i32, %c0_i32_0 : i32, i32
  }
  func.func @transform_2(%arg0: i32) -> (i32, i32) {
    %c0_i32 = arith.constant 0 : i32
    %c0_i32_0 = arith.constant 0 : i32
    %c0_i32_1 = arith.constant 0 : i32
    return %c0_i32, %c0_i32_0 : i32, i32
  }
  func.func @transform_3(%arg0: i32) -> (i32, i32) {
    %c0_i32 = arith.constant 0 : i32
    %c0_i32_0 = arith.constant 0 : i32
    %c0_i32_1 = arith.constant 0 : i32
    return %c0_i32, %c0_i32_0 : i32, i32
  }
  func.func @transform_4(%arg0: i32) -> (i32, i32) {
    %c0_i32 = arith.constant 0 : i32
    %c0_i32_0 = arith.constant 0 : i32
    %c0_i32_1 = arith.constant 0 : i32
    return %c0_i32, %c0_i32_0 : i32, i32
  }
  func.func @transform_5(%arg0: i32) -> (i32, i32) {
    %c0_i32 = arith.constant 0 : i32
    %c0_i32_0 = arith.constant 0 : i32
    %c0_i32_1 = arith.constant 0 : i32
    return %c0_i32, %c0_i32_0 : i32, i32
  }
  func.func @transform_6(%arg0: i32) -> (i32, i32) {
    %c0_i32 = arith.constant 0 : i32
    %c0_i32_0 = arith.constant 0 : i32
    %c0_i32_1 = arith.constant 0 : i32
    return %c0_i32, %c0_i32_0 : i32, i32
  }
  func.func @transform_7(%arg0: i32) -> (i32, i32, i32) {
    %c0_i32 = arith.constant 0 : i32
    %c0_i32_0 = arith.constant 0 : i32
    %c0_i32_1 = arith.constant 0 : i32
    return %arg0, %c0_i32, %c0_i32_0 : i32, i32, i32
  }
}

</mosaic_0001>

<llo_original>
// kernel: tpu_custom_call.1
$region0: #{tpu_custom_call.1}
  #allocation0 [shape = 'u32[]', space=smem, size = 0x4, offset = 0x4, fixed_abs, tag = 'smem constant byte address 0x4 - core index']
  #allocation1 [shape = 'u32[144,128]{1,0:T(1,128)}', space=vmem, size = 0x12000, scoped, tag = 'internal scratch']
  %s0 = inlined_call_operand.hbm [shape: f32[2,32,256], index: 0, kind: input, shape index: {}]
  %s1 = inlined_call_operand.vmem [shape: f32[8,32], index: 1, kind: input, shape index: {}]
  %s2 = inlined_call_operand.vmem [shape: f32[8,1], index: 2, kind: input, shape index: {}]
  %s3 = inlined_call_operand.vmem [shape: f32[8,24], index: 3, kind: input, shape index: {}]
  %s4 = inlined_call_operand.vmem [shape: f32[8,1], index: 4, kind: input, shape index: {}]
  %s5 = inlined_call_operand.vmem [shape: f32[32,8], index: 5, kind: input, shape index: {}]
  %s6 = inlined_call_operand.vmem [shape: f32[32,1], index: 6, kind: input, shape index: {}]
  %s7 = inlined_call_operand.hbm [shape: f32[2,32,256], index: 7, kind: output, shape index: {}]
  %s8 = sld [smem:[#allocation0]]
  $region65: #{tpu_custom_call.1} parent=0
    _
  %s10 = ssub.s32 1, %s8
  %s11 = scalar_select 0, %s10, %s8
  $region1: #{tpu_custom_call.1} parent=0
    #allocation2 [shape = 'u8[65536]{0}', space=vmem, size = 0x10000, scoped, tag = 'input window, operand 0']
    #allocation3 [shape = 's32[2]{0}', space=sflag, size = 0x8, scoped, tag = 'scoped memory for tpu_custom_call.1']
    #allocation4 [shape = 's32[2]{0}', space=sflag, size = 0x8, scoped, tag = 'scoped memory for tpu_custom_call.1']
    #allocation5 [shape = 'u8[65536]{0}', space=vmem, size = 0x10000, scoped, tag = 'output window, operand 0']
    %12 = vsyncpa [#allocation3], 0
    %s13 = scalar_lea.sflag [#allocation3], 1
    %14 = vsyncpa %s13, 0
    %15 = vsyncpa [#allocation4], 0
    %s16 = scalar_lea.sflag [#allocation4], 1
    %17 = vsyncpa %s16, 0
    loop: start=0, step=1, limit=4
    $region2: #{tpu_custom_call.1} parent=1 // loop_pre_header
      _
    $region3: #{tpu_custom_call.1} parent=1 // loop_header
      %s19 = sphi 0, %s23
      %p20 = scmp.ge.s32.totalorder %s19, 4
      %s29 = sphi 0, %s31
      %s32 = sphi 0, %s29
      %s33 = sphi 0, %s32
      %s49 = sphi 0, %s33
      %s53 = sphi 0, %s53
      %s55 = sphi 0, %s53
      %s56 = sphi 0, %s55
      %s70 = sphi 0, %s56
      %s74 = sphi 0, %s74
      %s76 = sphi 0, %s74
      %s77 = sphi 0, %s76
      %s91 = sphi 0, %s77
      %s95 = sphi 0, %s95
      %s97 = sphi 0, %s95
      %s98 = sphi 0, %s97
      %s112 = sphi 0, %s98
      %s116 = sphi 0, %s116
      %s118 = sphi 0, %s116
      %s119 = sphi 0, %s118
      %s133 = sphi 0, %s119
      %s137 = sphi 0, %s137
      %s139 = sphi 0, %s137
      %s140 = sphi 0, %s139
      %s154 = sphi 0, %s140
      %s158 = sphi 0, %s158
      %s160 = sphi 0, %s158
      %s161 = sphi 0, %s160
      %s175 = sphi 0, %s161
      %s181 = sphi 0, %s183
      %s184 = sphi 0, %s181
      %s185 = sphi 0, %s184
      %s201 = sphi 0, %s185
    $region4: #{tpu_custom_call.1} parent=1 // loop_header_branch
      %22 = sbr.rel (%p20) target = $region8
    $region5: #{tpu_custom_call.1} parent=1 // loop_body
      %s24 = ssub.s32 %s19, 1
      %s25 = ssub.s32 %s19, 2
      %s26 = sadd.s32 %s19, 1
      %s27 = ssub.s32 %s19, %s26
      %p28 = scmp.eq.s32.totalorder %s27, 0
      %s30 = sadd.s32 %s29, 1
      %s31 = scalar_select %p28, %s29, %s30
      %p34 = pneg %p28
      %p35 = scmp.eq.s32.totalorder %s19, 1
      %p36 = por %p34, %p35
      %p37 = scmp.ne.s32.totalorder %s29, %s32
      %p38 = scmp.eq.s32.totalorder %s19, 0
      %p39 = por %p37, %p38
      %p40 = scmp.ne.s32.totalorder %s29, %s32
      %p41 = scmp.eq.s32.totalorder %s24, 1
      %p42 = por %p40, %p41
      %p43 = scmp.ne.s32.totalorder %s32, %s33
      %p44 = scmp.eq.s32.totalorder %s24, 0
      %p45 = por %p43, %p44
      %p46 = scmp.ne.s32.totalorder %s32, %s33
      %p47 = scmp.eq.s32.totalorder %s25, 1
      %p48 = por %p46, %p47
      %p50 = scmp.ne.s32.totalorder %s33, %s49
      %p51 = scmp.eq.s32.totalorder %s25, 0
      %p52 = por %p50, %p51
      %s54 = sadd.s32 %s53, 1
      %p57 = scmp.eq.s32.totalorder %s19, 1
      %p58 = scmp.ne.s32.totalorder %s53, %s55
      %p59 = scmp.eq.s32.totalorder %s19, 0
      %p60 = por %p58, %p59
      %p61 = scmp.ne.s32.totalorder %s53, %s55
      %p62 = scmp.eq.s32.totalorder %s24, 1
      %p63 = por %p61, %p62
      %p64 = scmp.ne.s32.totalorder %s55, %s56
      %p65 = scmp.eq.s32.totalorder %s24, 0
      %p66 = por %p64, %p65
      %p67 = scmp.ne.s32.totalorder %s55, %s56
      %p68 = scmp.eq.s32.totalorder %s25, 1
      %p69 = por %p67, %p68
      %p71 = scmp.ne.s32.totalorder %s56, %s70
      %p72 = scmp.eq.s32.totalorder %s25, 0
      %p73 = por %p71, %p72
      %s75 = sadd.s32 %s74, 1
      %p78 = scmp.eq.s32.totalorder %s19, 1
      %p79 = scmp.ne.s32.totalorder %s74, %s76
      %p80 = scmp.eq.s32.totalorder %s19, 0
      %p81 = por %p79, %p80
      %p82 = scmp.ne.s32.totalorder %s74, %s76
      %p83 = scmp.eq.s32.totalorder %s24, 1
      %p84 = por %p82, %p83
      %p85 = scmp.ne.s32.totalorder %s76, %s77
      %p86 = scmp.eq.s32.totalorder %s24, 0
      %p87 = por %p85, %p86
      %p88 = scmp.ne.s32.totalorder %s76, %s77
      %p89 = scmp.eq.s32.totalorder %s25, 1
      %p90 = por %p88, %p89
      %p92 = scmp.ne.s32.totalorder %s77, %s91
      %p93 = scmp.eq.s32.totalorder %s25, 0
      %p94 = por %p92, %p93
      %s96 = sadd.s32 %s95, 1
      %p99 = scmp.eq.s32.totalorder %s19, 1
      %p100 = scmp.ne.s32.totalorder %s95, %s97
      %p101 = scmp.eq.s32.totalorder %s19, 0
      %p102 = por %p100, %p101
      %p103 = scmp.ne.s32.totalorder %s95, %s97
      %p104 = scmp.eq.s32.totalorder %s24, 1
      %p105 = por %p103, %p104
      %p106 = scmp.ne.s32.totalorder %s97, %s98
      %p107 = scmp.eq.s32.totalorder %s24, 0
      %p108 = por %p106, %p107
      %p109 = scmp.ne.s32.totalorder %s97, %s98
      %p110 = scmp.eq.s32.totalorder %s25, 1
      %p111 = por %p109, %p110
      %p113 = scmp.ne.s32.totalorder %s98, %s112
      %p114 = scmp.eq.s32.totalorder %s25, 0
      %p115 = por %p113, %p114
      %s117 = sadd.s32 %s116, 1
      %p120 = scmp.eq.s32.totalorder %s19, 1
      %p121 = scmp.ne.s32.totalorder %s116, %s118
      %p122 = scmp.eq.s32.totalorder %s19, 0
      %p123 = por %p121, %p122
      %p124 = scmp.ne.s32.totalorder %s116, %s118
      %p125 = scmp.eq.s32.totalorder %s24, 1
      %p126 = por %p124, %p125
      %p127 = scmp.ne.s32.totalorder %s118, %s119
      %p128 = scmp.eq.s32.totalorder %s24, 0
      %p129 = por %p127, %p128
      %p130 = scmp.ne.s32.totalorder %s118, %s119
      %p131 = scmp.eq.s32.totalorder %s25, 1
      %p132 = por %p130, %p131
      %p134 = scmp.ne.s32.totalorder %s119, %s133
      %p135 = scmp.eq.s32.totalorder %s25, 0
      %p136 = por %p134, %p135
      %s138 = sadd.s32 %s137, 1
      %p141 = scmp.eq.s32.totalorder %s19, 1
      %p142 = scmp.ne.s32.totalorder %s137, %s139
      %p143 = scmp.eq.s32.totalorder %s19, 0
      %p144 = por %p142, %p143
      %p145 = scmp.ne.s32.totalorder %s137, %s139
      %p146 = scmp.eq.s32.totalorder %s24, 1
      %p147 = por %p145, %p146
      %p148 = scmp.ne.s32.totalorder %s139, %s140
      %p149 = scmp.eq.s32.totalorder %s24, 0
      %p150 = por %p148, %p149
      %p151 = scmp.ne.s32.totalorder %s139, %s140
      %p152 = scmp.eq.s32.totalorder %s25, 1
      %p153 = por %p151, %p152
      %p155 = scmp.ne.s32.totalorder %s140, %s154
      %p156 = scmp.eq.s32.totalorder %s25, 0
      %p157 = por %p155, %p156
      %s159 = sadd.s32 %s158, 1
      %p162 = scmp.eq.s32.totalorder %s19, 1
      %p163 = scmp.ne.s32.totalorder %s158, %s160
      %p164 = scmp.eq.s32.totalorder %s19, 0
      %p165 = por %p163, %p164
      %p166 = scmp.ne.s32.totalorder %s158, %s160
      %p167 = scmp.eq.s32.totalorder %s24, 1
      %p168 = por %p166, %p167
      %p169 = scmp.ne.s32.totalorder %s160, %s161
      %p170 = scmp.eq.s32.totalorder %s24, 0
      %p171 = por %p169, %p170
      %p172 = scmp.ne.s32.totalorder %s160, %s161
      %p173 = scmp.eq.s32.totalorder %s25, 1
      %p174 = por %p172, %p173
      %p176 = scmp.ne.s32.totalorder %s161, %s175
      %p177 = scmp.eq.s32.totalorder %s25, 0
      %p178 = por %p176, %p177
      %s179 = ssub.s32 %s19, %s26
      %p180 = scmp.eq.s32.totalorder %s179, 0
      %s182 = sadd.s32 %s181, 1
      %s183 = scalar_select %p180, %s181, %s182
      %p186 = pneg %p180
      %p187 = scmp.eq.s32.totalorder %s19, 1
      %p188 = por %p186, %p187
      %p189 = scmp.ne.s32.totalorder %s181, %s184
      %p190 = scmp.eq.s32.totalorder %s19, 0
      %p191 = por %p189, %p190
      %p192 = scmp.ne.s32.totalorder %s181, %s184
      %p193 = scmp.eq.s32.totalorder %s24, 1
      %p194 = por %p192, %p193
      %p195 = scmp.ne.s32.totalorder %s184, %s185
      %p196 = scmp.eq.s32.totalorder %s24, 0
      %p197 = por %p195, %p196
      %p198 = scmp.ne.s32.totalorder %s184, %s185
      %p199 = scmp.eq.s32.totalorder %s25, 1
      %p200 = por %p198, %p199
      %p202 = scmp.ne.s32.totalorder %s185, %s201
      %p203 = scmp.eq.s32.totalorder %s25, 0
      %p204 = por %p202, %p203
      %p205 = scmp.le.s32.totalorder 1, %s19
      %p206 = scmp.lt.s32.totalorder %s19, 3
      %p207 = pnand %p205, %p206
      %p208 = pneg %p207
      // Predicated region
      $region9: #{tpu_custom_call.1} parent=5 // pred_check
        _
      $region10: #{tpu_custom_call.1} parent=5 // pred_check_branch
        %210 = sbr.rel (%p207) target = $region12
      $region11: #{tpu_custom_call.1} parent=5 // pred_region
        %s211 = ssub.s32 %s19, 1
        // Predicated region
        $region13: #{tpu_custom_call.1} parent=11 // pred_check
          %p212 = pneg %p66
        $region14: #{tpu_custom_call.1} parent=11 // pred_check_branch
          %214 = sbr.rel (%p212) target = $region16
        $region15: #{tpu_custom_call.1} parent=11 // pred_region
          _
        $region16: #{tpu_custom_call.1} parent=11 // pred_fallthru
          _
        // Predicated region
        $region17: #{tpu_custom_call.1} parent=11 // pred_check
          %p215 = pneg %p87
        $region18: #{tpu_custom_call.1} parent=11 // pred_check_branch
          %217 = sbr.rel (%p215) target = $region20
        $region19: #{tpu_custom_call.1} parent=11 // pred_region
          _
        $region20: #{tpu_custom_call.1} parent=11 // pred_fallthru
          _
        // Predicated region
        $region21: #{tpu_custom_call.1} parent=11 // pred_check
          %p218 = pneg %p108
        $region22: #{tpu_custom_call.1} parent=11 // pred_check_branch
          %220 = sbr.rel (%p218) target = $region24
        $region23: #{tpu_custom_call.1} parent=11 // pred_region
          _
        $region24: #{tpu_custom_call.1} parent=11 // pred_fallthru
          _
        // Predicated region
        $region25: #{tpu_custom_call.1} parent=11 // pred_check
          %p221 = pneg %p129
        $region26: #{tpu_custom_call.1} parent=11 // pred_check_branch
          %223 = sbr.rel (%p221) target = $region28
        $region27: #{tpu_custom_call.1} parent=11 // pred_region
          _
        $region28: #{tpu_custom_call.1} parent=11 // pred_fallthru
          _
        // Predicated region
        $region29: #{tpu_custom_call.1} parent=11 // pred_check
          %p224 = pneg %p150
        $region30: #{tpu_custom_call.1} parent=11 // pred_check_branch
          %226 = sbr.rel (%p224) target = $region32
        $region31: #{tpu_custom_call.1} parent=11 // pred_region
          _
        $region32: #{tpu_custom_call.1} parent=11 // pred_fallthru
          _
        // Predicated region
        $region33: #{tpu_custom_call.1} parent=11 // pred_check
          %p227 = pneg %p171
        $region34: #{tpu_custom_call.1} parent=11 // pred_check_branch
          %229 = sbr.rel (%p227) target = $region36
        $region35: #{tpu_custom_call.1} parent=11 // pred_region
          _
        $region36: #{tpu_custom_call.1} parent=11 // pred_fallthru
          _
      $region12: #{tpu_custom_call.1} parent=5 // pred_fallthru
        _
      %p230 = scmp.lt.s32.totalorder %s19, 2
      // Predicated region
      $region37: #{tpu_custom_call.1} parent=5 // pred_check
        %p231 = pneg %p230
      $region38: #{tpu_custom_call.1} parent=5 // pred_check_branch
        %233 = sbr.rel (%p231) target = $region40
      $region39: #{tpu_custom_call.1} parent=5 // pred_region
        // Predicated region
        $region41: #{tpu_custom_call.1} parent=39 // pred_check
          %p234 = pneg %p39
        $region42: #{tpu_custom_call.1} parent=39 // pred_check_branch
          %236 = sbr.rel (%p234) target = $region44
        $region43: #{tpu_custom_call.1} parent=39 // pred_region
          %s237 = sand.u32 %s29, 1
          %s238 = scalar_lea.sflag [#allocation3], %s237
          %s239 = sand.u32 %s29, 1
          %s240 = smul.addr %s239, 64
          %s241 = scalar_lea.vmem [#allocation2], %s240
          %s243 = ssub.s32 1024, 1024
          %244 = vsyncadd %s238, %s243
          %s245 = smul.addr %s19, 8
          %s246 = smul.addr %s245, 128
          %s247 = scalar_lea.hbm %s0, %s246
          %s248 = sshll.u32 %s241, 4
          %s249 = int_to_ptr.vmem [resolvable:$true] %s248
          %254 = dma.hbm_to_vmem [thread:$0]  %s247, 1024, %s249, %s238, 256, 256, 16
        $region44: #{tpu_custom_call.1} parent=39 // pred_fallthru
          _
      $region40: #{tpu_custom_call.1} parent=5 // pred_fallthru
        _
      %p255 = scmp.le.s32.totalorder 1, %s19
      %p256 = scmp.lt.s32.totalorder %s19, 3
      %p257 = pnand %p255, %p256
      %p258 = pneg %p257
      // Predicated region
      $region45: #{tpu_custom_call.1} parent=5 // pred_check
        _
      $region46: #{tpu_custom_call.1} parent=5 // pred_check_branch
        %260 = sbr.rel (%p257) target = $region48
      $region47: #{tpu_custom_call.1} parent=5 // pred_region
        %s261 = ssub.s32 %s19, 1
        %s262 = sand.u32 %s32, 1
        %s263 = scalar_lea.sflag [#allocation3], %s262
        %s264 = sand.u32 %s32, 1
        %s265 = smul.addr %s264, 64
        %s266 = scalar_lea.vmem [#allocation2], %s265
        // Predicated region
        $region49: #{tpu_custom_call.1} parent=47 // pred_check
          %p267 = pneg %p45
        $region50: #{tpu_custom_call.1} parent=47 // pred_check_branch
          %269 = sbr.rel (%p267) target = $region52
        $region51: #{tpu_custom_call.1} parent=47 // pred_region
          %270 = dma.done %s263, 1024
        $region52: #{tpu_custom_call.1} parent=47 // pred_fallthru
          _
        %s271 = sand.u32 %s32, 1
        %s272 = scalar_lea.sflag [#allocation3], %s271
        %s273 = sand.u32 %s32, 1
        %s274 = smul.addr %s273, 64
        %s275 = scalar_lea.vmem [#allocation2], %s274
        %p276 = pneg %p45
        %p277 = pneg %p42
        %p278 = pneg %p66
        %p279 = pneg %p63
        %p280 = pneg %p87
        %p281 = pneg %p84
        %p282 = pneg %p108
        %p283 = pneg %p105
        %p284 = pneg %p129
        %p285 = pneg %p126
        %p286 = pneg %p150
        %p287 = pneg %p147
        %p288 = pneg %p171
        %p289 = pneg %p168
        %p290 = pneg %p197
        %p291 = pneg %p194
        %s292 = sand.u32 %s184, 1
        %s293 = scalar_lea.sflag [#allocation4], %s292
        %s294 = sand.u32 %s184, 1
        %s295 = smul.addr %s294, 64
        %s296 = scalar_lea.vmem [#allocation5], %s295
        %v297 = vld [vmem:[%s266] sm:$0xff]
        %v298 = vld [vmem:[%s266 + $0x8] sm:$0xff]
        %v299 = vld [vmem:[%s266 + $0x10] sm:$0xff]
        %v300 = vld [vmem:[%s266 + $0x18] sm:$0xff]
        %v301 = vld [vmem:[%s266 + $0x20] sm:$0xff]
        %v302 = vld [vmem:[%s266 + $0x28] sm:$0xff]
        %v303 = vld [vmem:[%s266 + $0x30] sm:$0xff]
        %v304 = vld [vmem:[%s266 + $0x38] sm:$0xff]
        %v305 = vld [vmem:[%s1] sm:$0xff]
        %v306 = vld [vmem:[%s2] sm:$0xff]
        %308 = vset.pattern.permute.xlu0 0
        %309 = vperm.xlu0 %308, %v306
        %v310 = vpop.permute.xlu0 %309
        %vm312 = vcmask 261120
        %v314 = vsel %vm312, %v305, 0
        %316 = vmatprep.subr.mxu0 %v298
        %317 = vmatpush1.msra.mxu0 %v297
        %318 = vmatprep.subr.mxu0 %v300
        %319 = vmatpush1.msra.mxu0 %v299
        %320 = vmatprep.subr.mxu0 %v302
        %321 = vmatpush1.msra.mxu0 %v301
        %322 = vmatprep.subr.mxu0 %v304
        %323 = vmatpush1.msra.mxu0 %v303
        %324 = vmatprep.subr.mxu0 0.0
        %325 = vmatpush1.msra.mxu0 0.0
        %326 = vmatprep.subr.mxu0 0.0
        %327 = vmatpush1.msra.mxu0 0.0
        %328 = vmatprep.subr.mxu0 0.0
        %329 = vmatpush1.msra.mxu0 0.0
        %330 = vmatprep.subr.mxu0 0.0
        %331 = vmatpush1.msra.mxu0 0.0
        %332 = vmatprep.subr.mxu0 0.0
        %333 = vmatpush1.msra.mxu0 0.0
        %334 = vmatprep.subr.mxu0 0.0
        %335 = vmatpush1.msra.mxu0 0.0
        %336 = vmatprep.subr.mxu0 0.0
        %337 = vmatpush1.msra.mxu0 0.0
        %338 = vmatprep.subr.mxu0 0.0
        %339 = vmatpush1.msra.mxu0 0.0
        %340 = vmatprep.subr.mxu0 0.0
        %341 = vmatpush1.msra.mxu0 0.0
        %342 = vmatprep.subr.mxu0 0.0
        %343 = vmatpush1.msra.mxu0 0.0
        %344 = vmatprep.subr.mxu0 0.0
        %345 = vmatpush1.msra.mxu0 0.0
        %346 = vmatprep.subr.mxu0 0.0
        %347 = vmatpush1.msra.mxu0 0.0
        %348 = vmatprep.subr.mxu0 0.0
        %349 = vmatpush1.msra.mxu0 0.0
        %350 = vmatprep.subr.mxu0 0.0
        %351 = vmatpush1.msra.mxu0 0.0
        %352 = vmatprep.subr.mxu0 0.0
        %353 = vmatpush1.msra.mxu0 0.0
        %354 = vmatprep.subr.mxu0 0.0
        %355 = vmatpush1.msra.mxu0 0.0
        %356 = vmatprep.subr.mxu0 0.0
        %357 = vmatpush1.msra.mxu0 0.0
        %358 = vmatprep.subr.mxu0 0.0
        %359 = vmatpush1.msra.mxu0 0.0
        %360 = vmatprep.subr.mxu0 0.0
        %361 = vmatpush1.msra.mxu0 0.0
        %362 = vmatprep.subr.mxu0 0.0
        %363 = vmatpush1.msra.mxu0 0.0
        %364 = vmatprep.subr.mxu0 0.0
        %365 = vmatpush1.msra.mxu0 0.0
        %366 = vmatprep.subr.mxu0 0.0
        %367 = vmatpush1.msra.mxu0 0.0
        %368 = vmatprep.subr.mxu0 0.0
        %369 = vmatpush1.msra.mxu0 0.0
        %370 = vmatprep.subr.mxu0 0.0
        %371 = vmatpush1.msra.mxu0 0.0
        %372 = vmatprep.subr.mxu0 0.0
        %373 = vmatpush1.msra.mxu0 0.0
        %374 = vmatprep.subr.mxu0 0.0
        %375 = vmatpush1.msra.mxu0 0.0
        %376 = vmatprep.subr.mxu0 0.0
        %377 = vmatpush1.msra.mxu0 0.0
        %378 = vmatprep.subr.mxu0 0.0
        %379 = vmatpush1.msra.mxu0 0.0
        %380 = vmatprep.mubr.f32.mxu0 0.0
        %381 = vmatmul.mubr.f32.gmra.mrb[0].mxu0 %v314
        %v382 = vpop.f32.mrb[0].mxu0
        %v383 = vadd.f32 %v310, %v382
        %v384 = vpop.f32.mrb[0].mxu0
        %v385 = vadd.f32 %v310, %v384
        %386 = vdwg.mxu0
        %vm387 = vcmp.gt.f32.partialorder %v383, 0.0
        %vm388 = vcmp.gt.f32.partialorder %v385, 0.0
        %v389 = vmul.f32 %v383, 0.01
        %v390 = vmul.f32 %v385, 0.01
        %v391 = vsel %vm387, %v383, %v389
        %v392 = vsel %vm388, %v385, %v390
        %v393 = vlaneseq
        %v394 = vand.u32 %v393, 127
        %v395 = vadd.s32 %v394, 128
        %vm396 = vcmp.ge.s32.totalorder %v394, 16
        %vm397 = vcmp.ge.s32.totalorder %v395, 16
        %398 = vrot.lane.b32.xlu0 %v391, 16
        %v399 = vpop.permute.xlu0 %398
        %400 = vrot.lane.b32.xlu0 %v392, 16
        %v401 = vpop.permute.xlu0 %400
        %vm402 = vcmp.lt.s32.totalorder %v394, 16
        %v403 = vsel %vm402, %v399, %v401
        %v404 = vsel %vm402, %v401, %v399
        %v405 = vsel %vm396, %v404, 0.0
        %v406 = vsel %vm397, %v403, 0.0
        %vm407 = vcmp.lt.s32.totalorder %v394, 240
        %vm408 = vcmp.lt.s32.totalorder %v395, 240
        %409 = vrot.lane.b32.xlu0 %v391, 112
        %v410 = vpop.permute.xlu0 %409
        %411 = vrot.lane.b32.xlu0 %v392, 112
        %v412 = vpop.permute.xlu0 %411
        %vm413 = vcmp.lt.s32.totalorder %v394, 112
        %v414 = vsel %vm413, %v410, %v412
        %v415 = vsel %vm413, %v412, %v410
        %v416 = vsel %vm407, %v414, 0.0
        %v417 = vsel %vm408, %v415, 0.0
        %v418 = vld [vmem:[%s3] sm:$0xff]
        %v419 = vld [vmem:[%s4] sm:$0xff]
        %421 = vset.pattern.permute.xlu0 0
        %422 = vperm.xlu0 %421, %v419
        %v423 = vpop.permute.xlu0 %422
        %vm425 = vcmask 195584
        %v427 = vsel %vm425, %v418, 0
        %429 = vmatprep.subr.mxu0 %v406
        %430 = vmatpush1.msra.mxu0 %v405
        %431 = vmatprep.subr.mxu0 %v392
        %432 = vmatpush1.msra.mxu0 %v391
        %433 = vmatprep.subr.mxu0 %v417
        %434 = vmatpush1.msra.mxu0 %v416
        %435 = vmatprep.subr.mxu0 0.0
        %436 = vmatpush1.msra.mxu0 0.0
        %437 = vmatprep.subr.mxu0 0.0
        %438 = vmatpush1.msra.mxu0 0.0
        %439 = vmatprep.subr.mxu0 0.0
        %440 = vmatpush1.msra.mxu0 0.0
        %441 = vmatprep.subr.mxu0 0.0
        %442 = vmatpush1.msra.mxu0 0.0
        %443 = vmatprep.subr.mxu0 0.0
        %444 = vmatpush1.msra.mxu0 0.0
        %445 = vmatprep.subr.mxu0 0.0
        %446 = vmatpush1.msra.mxu0 0.0
        %447 = vmatprep.subr.mxu0 0.0
        %448 = vmatpush1.msra.mxu0 0.0
        %449 = vmatprep.subr.mxu0 0.0
        %450 = vmatpush1.msra.mxu0 0.0
        %451 = vmatprep.subr.mxu0 0.0
        %452 = vmatpush1.msra.mxu0 0.0
        %453 = vmatprep.subr.mxu0 0.0
        %454 = vmatpush1.msra.mxu0 0.0
        %455 = vmatprep.subr.mxu0 0.0
        %456 = vmatpush1.msra.mxu0 0.0
        %457 = vmatprep.subr.mxu0 0.0
        %458 = vmatpush1.msra.mxu0 0.0
        %459 = vmatprep.subr.mxu0 0.0
        %460 = vmatpush1.msra.mxu0 0.0
        %461 = vmatprep.subr.mxu0 0.0
        %462 = vmatpush1.msra.mxu0 0.0
        %463 = vmatprep.subr.mxu0 0.0
        %464 = vmatpush1.msra.mxu0 0.0
        %465 = vmatprep.subr.mxu0 0.0
        %466 = vmatpush1.msra.mxu0 0.0
        %467 = vmatprep.subr.mxu0 0.0
        %468 = vmatpush1.msra.mxu0 0.0
        %469 = vmatprep.subr.mxu0 0.0
        %470 = vmatpush1.msra.mxu0 0.0
        %471 = vmatprep.subr.mxu0 0.0
        %472 = vmatpush1.msra.mxu0 0.0
        %473 = vmatprep.subr.mxu0 0.0
        %474 = vmatpush1.msra.mxu0 0.0
        %475 = vmatprep.subr.mxu0 0.0
        %476 = vmatpush1.msra.mxu0 0.0
        %477 = vmatprep.subr.mxu0 0.0
        %478 = vmatpush1.msra.mxu0 0.0
        %479 = vmatprep.subr.mxu0 0.0
        %480 = vmatpush1.msra.mxu0 0.0
        %481 = vmatprep.subr.mxu0 0.0
        %482 = vmatpush1.msra.mxu0 0.0
        %483 = vmatprep.subr.mxu0 0.0
        %484 = vmatpush1.msra.mxu0 0.0
        %485 = vmatprep.subr.mxu0 0.0
        %486 = vmatpush1.msra.mxu0 0.0
        %487 = vmatprep.subr.mxu0 0.0
        %488 = vmatpush1.msra.mxu0 0.0
        %489 = vmatprep.subr.mxu0 0.0
        %490 = vmatpush1.msra.mxu0 0.0
        %491 = vmatprep.subr.mxu0 0.0
        %492 = vmatpush1.msra.mxu0 0.0
        %493 = vmatprep.mubr.f32.mxu0 0.0
        %494 = vmatmul.mubr.f32.gmra.mrb[0].mxu0 %v427
        %v495 = vpop.f32.mrb[0].mxu0
        %v496 = vadd.f32 %v423, %v495
        %v497 = vpop.f32.mrb[0].mxu0
        %v498 = vadd.f32 %v423, %v497
        %499 = vdwg.mxu0
        %vm500 = vcmp.gt.f32.partialorder %v496, 0.0
        %vm501 = vcmp.gt.f32.partialorder %v498, 0.0
        %v502 = vmul.f32 %v496, 0.01
        %v503 = vmul.f32 %v498, 0.01
        %v504 = vsel %vm500, %v496, %v502
        %v505 = vsel %vm501, %v498, %v503
        %v506 = vld [vmem:[%s5] sm:$0xff]
        %v507 = vld [vmem:[%s5 + $0x8] sm:$0xff]
        %v508 = vld [vmem:[%s5 + $0x10] sm:$0xff]
        %v509 = vld [vmem:[%s5 + $0x18] sm:$0xff]
        %v510 = vld [vmem:[%s6] sm:$0xff]
        %v511 = vld [vmem:[%s6 + $0x8] sm:$0xff]
        %v512 = vld [vmem:[%s6 + $0x10] sm:$0xff]
        %v513 = vld [vmem:[%s6 + $0x18] sm:$0xff]
        %515 = vset.pattern.permute.xlu0 0
        %516 = vperm.xlu0 %515, %v510
        %v517 = vpop.permute.xlu0 %516
        %520 = vset.pattern.permute.xlu0 0
        %521 = vperm.xlu0 %520, %v511
        %v522 = vpop.permute.xlu0 %521
        %525 = vset.pattern.permute.xlu0 0
        %526 = vperm.xlu0 %525, %v512
        %v527 = vpop.permute.xlu0 %526
        %530 = vset.pattern.permute.xlu0 0
        %531 = vperm.xlu0 %530, %v513
        %v532 = vpop.permute.xlu0 %531
        %vm534 = vcmask 64512
        %v536 = vsel %vm534, %v506, 0
        %v539 = vsel %vm534, %v507, 0
        %v542 = vsel %vm534, %v508, 0
        %v545 = vsel %vm534, %v509, 0
        %547 = vmatprep.subr.mxu0 %v505
        %548 = vmatpush1.msra.mxu0 %v504
        %549 = vmatprep.subr.mxu0 0.0
        %550 = vmatpush1.msra.mxu0 0.0
        %551 = vmatprep.subr.mxu0 0.0
        %552 = vmatpush1.msra.mxu0 0.0
        %553 = vmatprep.subr.mxu0 0.0
        %554 = vmatpush1.msra.mxu0 0.0
        %555 = vmatprep.subr.mxu0 0.0
        %556 = vmatpush1.msra.mxu0 0.0
        %557 = vmatprep.subr.mxu0 0.0
        %558 = vmatpush1.msra.mxu0 0.0
        %559 = vmatprep.subr.mxu0 0.0
        %560 = vmatpush1.msra.mxu0 0.0
        %561 = vmatprep.subr.mxu0 0.0
        %562 = vmatpush1.msra.mxu0 0.0
        %563 = vmatprep.subr.mxu0 0.0
        %564 = vmatpush1.msra.mxu0 0.0
        %565 = vmatprep.subr.mxu0 0.0
        %566 = vmatpush1.msra.mxu0 0.0
        %567 = vmatprep.subr.mxu0 0.0
        %568 = vmatpush1.msra.mxu0 0.0
        %569 = vmatprep.subr.mxu0 0.0
        %570 = vmatpush1.msra.mxu0 0.0
        %571 = vmatprep.subr.mxu0 0.0
        %572 = vmatpush1.msra.mxu0 0.0
        %573 = vmatprep.subr.mxu0 0.0
        %574 = vmatpush1.msra.mxu0 0.0
        %575 = vmatprep.subr.mxu0 0.0
        %576 = vmatpush1.msra.mxu0 0.0
        %577 = vmatprep.subr.mxu0 0.0
        %578 = vmatpush1.msra.mxu0 0.0
        %579 = vmatprep.subr.mxu0 0.0
        %580 = vmatpush1.msra.mxu0 0.0
        %581 = vmatprep.subr.mxu0 0.0
        %582 = vmatpush1.msra.mxu0 0.0
        %583 = vmatprep.subr.mxu0 0.0
        %584 = vmatpush1.msra.mxu0 0.0
        %585 = vmatprep.subr.mxu0 0.0
        %586 = vmatpush1.msra.mxu0 0.0
        %587 = vmatprep.subr.mxu0 0.0
        %588 = vmatpush1.msra.mxu0 0.0
        %589 = vmatprep.subr.mxu0 0.0
        %590 = vmatpush1.msra.mxu0 0.0
        %591 = vmatprep.subr.mxu0 0.0
        %592 = vmatpush1.msra.mxu0 0.0
        %593 = vmatprep.subr.mxu0 0.0
        %594 = vmatpush1.msra.mxu0 0.0
        %595 = vmatprep.subr.mxu0 0.0
        %596 = vmatpush1.msra.mxu0 0.0
        %597 = vmatprep.subr.mxu0 0.0
        %598 = vmatpush1.msra.mxu0 0.0
        %599 = vmatprep.subr.mxu0 0.0
        %600 = vmatpush1.msra.mxu0 0.0
        %601 = vmatprep.subr.mxu0 0.0
        %602 = vmatpush1.msra.mxu0 0.0
        %603 = vmatprep.subr.mxu0 0.0
        %604 = vmatpush1.msra.mxu0 0.0
        %605 = vmatprep.subr.mxu0 0.0
        %606 = vmatpush1.msra.mxu0 0.0
        %607 = vmatprep.subr.mxu0 0.0
        %608 = vmatpush1.msra.mxu0 0.0
        %609 = vmatprep.subr.mxu0 0.0
        %610 = vmatpush1.msra.mxu0 0.0
        %611 = vmatprep.mubr.f32.mxu0 0.0
        %612 = vmatmul.mubr.f32.gmra.mrb[0].mxu0 %v536
        %v613 = vpop.f32.mrb[0].mxu0
        %v614 = vadd.f32 %v517, %v613
        %v615 = vpop.f32.mrb[0].mxu0
        %v616 = vadd.f32 %v517, %v615
        %617 = vmatprep.mubr.f32.mxu0 0.0
        %618 = vmatmul.mubr.f32.gmra.mrb[0].mxu0 %v539
        %v619 = vpop.f32.mrb[0].mxu0
        %v620 = vadd.f32 %v522, %v619
        %v621 = vpop.f32.mrb[0].mxu0
        %v622 = vadd.f32 %v522, %v621
        %623 = vmatprep.mubr.f32.mxu0 0.0
        %624 = vmatmul.mubr.f32.gmra.mrb[0].mxu0 %v542
        %v625 = vpop.f32.mrb[0].mxu0
        %v626 = vadd.f32 %v527, %v625
        %v627 = vpop.f32.mrb[0].mxu0
        %v628 = vadd.f32 %v527, %v627
        %629 = vmatprep.mubr.f32.mxu0 0.0
        %630 = vmatmul.mubr.f32.gmra.mrb[0].mxu0 %v545
        %v631 = vpop.f32.mrb[0].mxu0
        %v632 = vadd.f32 %v532, %v631
        %v633 = vpop.f32.mrb[0].mxu0
        %v634 = vadd.f32 %v532, %v633
        %635 = vdwg.mxu0
        %v636 = vadd.f32 %v614, %v297
        %v637 = vadd.f32 %v616, %v298
        %v638 = vadd.f32 %v620, %v299
        %v639 = vadd.f32 %v622, %v300
        %v640 = vadd.f32 %v626, %v301
        %v641 = vadd.f32 %v628, %v302
        %v642 = vadd.f32 %v632, %v303
        %v643 = vadd.f32 %v634, %v304
        %vm644 = vcmp.gt.f32.partialorder %v636, 0.0
        %vm645 = vcmp.gt.f32.partialorder %v637, 0.0
        %vm646 = vcmp.gt.f32.partialorder %v638, 0.0
        %vm647 = vcmp.gt.f32.partialorder %v639, 0.0
        %vm648 = vcmp.gt.f32.partialorder %v640, 0.0
        %vm649 = vcmp.gt.f32.partialorder %v641, 0.0
        %vm650 = vcmp.gt.f32.partialorder %v642, 0.0
        %vm651 = vcmp.gt.f32.partialorder %v643, 0.0
        %v652 = vmul.f32 %v636, 0.01
        %v653 = vmul.f32 %v637, 0.01
        %v654 = vmul.f32 %v638, 0.01
        %v655 = vmul.f32 %v639, 0.01
        %v656 = vmul.f32 %v640, 0.01
        %v657 = vmul.f32 %v641, 0.01
        %v658 = vmul.f32 %v642, 0.01
        %v659 = vmul.f32 %v643, 0.01
        %v660 = vsel %vm644, %v636, %v652
        %v661 = vsel %vm645, %v637, %v653
        %v662 = vsel %vm646, %v638, %v654
        %v663 = vsel %vm647, %v639, %v655
        %v664 = vsel %vm648, %v640, %v656
        %v665 = vsel %vm649, %v641, %v657
        %v666 = vsel %vm650, %v642, %v658
        %v667 = vsel %vm651, %v643, %v659
        %668 = vst [vmem:[%s296] sm:$0xff] %v660
        %669 = vst [vmem:[%s296 + $0x8] sm:$0xff] %v661
        %670 = vst [vmem:[%s296 + $0x10] sm:$0xff] %v662
        %671 = vst [vmem:[%s296 + $0x18] sm:$0xff] %v663
        %672 = vst [vmem:[%s296 + $0x20] sm:$0xff] %v664
        %673 = vst [vmem:[%s296 + $0x28] sm:$0xff] %v665
        %674 = vst [vmem:[%s296 + $0x30] sm:$0xff] %v666
        %675 = vst [vmem:[%s296 + $0x38] sm:$0xff] %v667
        %s676 = sand.u32 %s184, 1
        %s677 = scalar_lea.sflag [#allocation4], %s676
        %s678 = sand.u32 %s184, 1
        %s679 = smul.addr %s678, 64
        %s680 = scalar_lea.vmem [#allocation5], %s679
        // Predicated region
        $region53: #{tpu_custom_call.1} parent=47 // pred_check
          %p681 = pneg %p194
        $region54: #{tpu_custom_call.1} parent=47 // pred_check_branch
          %683 = sbr.rel (%p681) target = $region56
        $region55: #{tpu_custom_call.1} parent=47 // pred_region
          %s685 = ssub.s32 1024, 1024
          %686 = vsyncadd %s677, %s685
          %s687 = smul.addr %s24, 8
          %s688 = smul.addr %s687, 128
          %s689 = scalar_lea.hbm %s7, %s688
          %s690 = sshll.u32 %s680, 4
          %s691 = int_to_ptr.vmem [resolvable:$true] %s690
          %696 = dma.vmem_to_hbm [thread:$0]  %s691, 1024, %s689, %s677, 256, 256, 16
        $region56: #{tpu_custom_call.1} parent=47 // pred_fallthru
          _
      $region48: #{tpu_custom_call.1} parent=5 // pred_fallthru
        _
      %p697 = scmp.le.s32.totalorder 2, %s19
      // Predicated region
      $region57: #{tpu_custom_call.1} parent=5 // pred_check
        %p698 = pneg %p697
      $region58: #{tpu_custom_call.1} parent=5 // pred_check_branch
        %700 = sbr.rel (%p698) target = $region60
      $region59: #{tpu_custom_call.1} parent=5 // pred_region
        %s701 = ssub.s32 %s19, 2
        // Predicated region
        $region61: #{tpu_custom_call.1} parent=59 // pred_check
          %p702 = pneg %p200
        $region62: #{tpu_custom_call.1} parent=59 // pred_check_branch
          %704 = sbr.rel (%p702) target = $region64
        $region63: #{tpu_custom_call.1} parent=59 // pred_region
          %s705 = sand.u32 %s185, 1
          %s706 = scalar_lea.sflag [#allocation4], %s705
          %s707 = sand.u32 %s185, 1
          %s708 = smul.addr %s707, 64
          %s709 = scalar_lea.vmem [#allocation5], %s708
          %710 = dma.done %s706, 1024
        $region64: #{tpu_custom_call.1} parent=59 // pred_fallthru
          _
      $region60: #{tpu_custom_call.1} parent=5 // pred_fallthru
        _
    $region6: #{tpu_custom_call.1} parent=1 // loop_footer
      %s23 = sadd.s32 1, %s19
    $region7: #{tpu_custom_call.1} parent=1 // loop_footer_branch
      %18 = sbr.rel target = $region3
    $region8: #{tpu_custom_call.1} parent=1 // loop_exit
      _
    %711 = vsyncpa [#allocation3], 1
    %s712 = scalar_lea.sflag [#allocation3], 1
    %713 = vsyncpa %s712, 1
    %714 = vsyncpa [#allocation4], 1
    %s715 = scalar_lea.sflag [#allocation4], 1
    %716 = vsyncpa %s715, 1

</llo_original>
